<compile_context>
chip_gen: v7x
topology: tpu7x:2x2x1
jax: 0.10.0
libtpu: 0.0.40
codegen_flags: <defaults>
</compile_context>

<pallas_src>
import jax
import jax.numpy as jnp
from jax import lax
from jax.experimental import pallas as pl
from jax.experimental.pallas import tpu as pltpu


_MAX_BLOCK_ELEMS = 2048 * 128   # 1 MiB of f32 per array per pipeline buffer
_MIN_BLOCK_ELEMS = 64 * 1024    # don't shrink blocks below 256 KiB for parallelism
_MIN_TOTAL_BLOCKS = 4           # target parallel grid extent (keeps both v7x TCs busy)


def _balance_bce_kernel(pred_ref, gt_ref, mask_ref, neg_loss_ref, partial_ref):
    """Streaming balanced-BCE pass over one (1, TH, Wv) tile."""
    pred = pred_ref[...]              # f32, sigmoid outputs in (0, 1)
    gt = gt_ref[...]                  # f32, exact 0/1 map (module contract)
    mask = mask_ref[...]              # f32, exact 0/1 map (module contract)

    pos = gt * mask                   # exact 0/1 -> no trunc / byte-cast needed
    neg = mask - pos                  # == (1 - gt) * mask

    # Single log per element (EUP): for gt in {0, 1},
    #   -(gt*max(log p, -100) + (1-gt)*max(log(1-p), -100))
    #       == -max(log(where(gt, p, 1-p)), -100)
    sel = jnp.where(gt > 0.5, pred, 1.0 - pred)
    loss = -jnp.maximum(jnp.log(sel), -100.0)

    neg_loss = loss * neg
    neg_loss_ref[...] = neg_loss      # full masked-negative map -> top-k in glue

    # Per-grid-step partial reductions to SMEM (no carried accumulator, so both
    # grid axes stay "parallel" / megacore-shardable).
    partial_ref[0, 0, 0] = jnp.sum(loss * pos)   # positive loss sum
    partial_ref[0, 0, 1] = jnp.sum(pos)          # positive count
    partial_ref[0, 0, 2] = jnp.sum(neg)          # negative count
    partial_ref[0, 0, 3] = jnp.sum(neg_loss)     # total masked-negative loss sum


def _choose_row_tile(hv, wv, n_batch):
    """Largest legal row tile (multiple of 8, or the full row extent) that fits
    the per-array VMEM budget.  Prefers leaving >= _MIN_TOTAL_BLOCKS grid steps
    as long as blocks stay >= _MIN_BLOCK_ELEMS.  Returns None if `hv` needs
    row padding first."""
    cap = max(8, _MAX_BLOCK_ELEMS // wv)
    divisors = [d for d in range(8, min(hv, cap) + 1, 8) if hv % d == 0]
    if hv <= cap:
        divisors.append(hv)           # full-extent row block is always legal
    if not divisors:
        return None
    ok = [d for d in divisors
          if n_batch * (hv // d) >= _MIN_TOTAL_BLOCKS and d * wv >= _MIN_BLOCK_ELEMS]
    return max(ok) if ok else max(divisors)


def _plan_layout(n, h, w):
    """Lane-dense (Hv, Wv) relayout of the flattened H*W plane plus a row tile.

    Returns (hv, wv, th, pad_elems).  `pad_elems` zeros are appended to the
    flattened plane; zero padding keeps every reduction and the top-k exact
    because padded positions carry mask == 0 (and a finite, zero loss)."""
    m = h * w
    pad = 0
    for wv in (512, 256, 128):        # widest lane extent that divides exactly
        if m % wv == 0:
            hv = m // wv
            break
    else:                             # awkward size: pad up to a 128-lane multiple
        wv = 128
        hv = -(-m // wv)
        pad = hv * wv - m
    th = _choose_row_tile(hv, wv, n)
    if th is None:                    # no usable divisor: pad rows to a full tile
        th = max(8, (_MAX_BLOCK_ELEMS // wv) // 8 * 8)
        hv_padded = -(-hv // th) * th
        pad += (hv_padded - hv) * wv
        hv = hv_padded
    return hv, wv, th, pad


def balance_cross_entropy_loss(pred, gt, mask, negative_ratio=3.0, eps=1e-8):
    """pred: (N,1,H,W) sigmoid outputs; gt, mask: (N,H,W) exact 0/1 maps.

    Returns the scalar balanced BCE loss (matches the PyTorch module)."""
    N, C, H, W = pred.shape
    assert C == 1

    hv, wv, th, pad = _plan_layout(N, H, W)

    def _prep(x):
        x = x.reshape(N, H * W).astype(jnp.float32)   # no-op cast if already f32
        if pad:
            x = jnp.pad(x, ((0, 0), (0, pad)))        # zeros: mask=0, loss=0
        return x.reshape(N, hv, wv)

    pred_v = _prep(pred)
    gt_v = _prep(gt)
    mask_v = _prep(mask)

    grid_h = hv // th
    grid = (N, grid_h)

    cost = pl.CostEstimate(
        flops=12 * N * hv * wv,
        transcendentals=N * hv * wv,                   # one log per element
        bytes_accessed=16 * N * hv * wv + 16 * N * grid_h,
    )

    def _tile_spec():
        return pl.BlockSpec((1, th, wv), lambda n, h: (n, h, 0))

    neg_loss, partials = pl.pallas_call(
        _balance_bce_kernel,
        out_shape=(
            jax.ShapeDtypeStruct((N, hv, wv), jnp.float32),
            jax.ShapeDtypeStruct((N, grid_h, 4), jnp.float32),
        ),
        grid_spec=pltpu.PrefetchScalarGridSpec(
            num_scalar_prefetch=0,
            grid=grid,
            in_specs=[_tile_spec(), _tile_spec(), _tile_spec()],
            out_specs=(
                _tile_spec(),
                pl.BlockSpec((1, 1, 4), lambda n, h: (n, h, 0),
                             memory_space=pltpu.MemorySpace.SMEM),
            ),
        ),
        compiler_params=pltpu.CompilerParams(
            dimension_semantics=("parallel", "parallel"),
            vmem_limit_bytes=32 * 1024 * 1024,
        ),
        cost_estimate=cost,
    )(pred_v, gt_v, mask_v)

    pos_sum = jnp.sum(partials[:, :, 0])
    positive_count = jnp.sum(partials[:, :, 1])
    negative_total = jnp.sum(partials[:, :, 2])
    neg_loss_total = jnp.sum(partials[:, :, 3])

    # min(int(neg_total), int(pos_count * ratio)): counts are exact integer
    # floats, so int() truncation == astype(int32) for non-negative values.
    neg_total_i = negative_total.astype(jnp.int32)
    negative_count = jnp.minimum(
        neg_total_i, (positive_count * negative_ratio).astype(jnp.int32))

    flat = neg_loss.reshape(-1)

    def _topk_sum_sorted():
        # Exact dynamic-k top-k: descending sort + int32 index mask
        # (value-identical to torch.topk(...).sum(); padded zeros are harmless
        # since k <= number of real negative positions and losses are >= 0).
        sorted_desc = -jnp.sort(-flat)
        idx = jnp.arange(flat.shape[0], dtype=jnp.int32)
        return jnp.sum(jnp.where(idx < negative_count, sorted_desc, 0.0))

    # Fast path: if every negative is kept (k == neg_total), the top-k sum is
    # just the full masked-negative loss sum already computed in-kernel.
    topk_neg_sum = lax.cond(negative_count >= neg_total_i,
                            lambda: neg_loss_total,
                            _topk_sum_sorted)

    return (pos_sum + topk_neg_sum) / (
        positive_count + negative_count.astype(jnp.float32) + eps)


def _reference_jax(pred, gt, mask, negative_ratio=3.0, eps=1e-8):
    """Pure-JAX mirror of the PyTorch forward (two-log BCE + full sort)."""
    p = pred.reshape(pred.shape[0], pred.shape[2], pred.shape[3]).astype(jnp.float32)
    gt = gt.astype(jnp.float32)
    mask = mask.astype(jnp.float32)
    positive = gt * mask
    negative = (1.0 - gt) * mask
    pos_count = jnp.sum(positive)
    neg_count = jnp.minimum(jnp.sum(negative).astype(jnp.int32),
                            (pos_count * negative_ratio).astype(jnp.int32))
    loss = -(gt * jnp.maximum(jnp.log(p), -100.0)
             + (1.0 - gt) * jnp.maximum(jnp.log(1.0 - p), -100.0))
    pos_loss = jnp.sum(loss * positive)
    neg_loss_flat = (loss * negative).reshape(-1)
    sorted_desc = -jnp.sort(-neg_loss_flat)
    idx = jnp.arange(neg_loss_flat.shape[0], dtype=jnp.int32)
    topk = jnp.sum(jnp.where(idx < neg_count, sorted_desc, 0.0))
    return (pos_loss + topk) / (pos_count + neg_count.astype(jnp.float32) + eps)


if __name__ == "__main__":
    root = jax.random.PRNGKey(0)

    configs = [
        # (N, H, W, gt_threshold): the threshold controls the pos/neg balance
        # so both the dynamic-k sort path (sparse positives) and the
        # k == neg_total fast path (dense positives) are exercised, plus one
        # awkward H*W shape to exercise the zero-padding layout path.
        (2, 16, 16, 0.9),
        (2, 16, 16, 0.3),
        (1, 10, 12, 0.8),
    ]
    for i, (n, h, w, thr) in enumerate(configs):
        k1, k2, k3 = jax.random.split(jax.random.fold_in(root, i), 3)
        pred = jax.nn.sigmoid(jax.random.normal(k1, (n, 1, h, w), dtype=jnp.float32))
        gt = (jax.random.uniform(k2, (n, h, w)) > thr).astype(jnp.float32)
        mask = (jax.random.uniform(k3, (n, h, w)) > 0.2).astype(jnp.float32)

        out = jax.block_until_ready(balance_cross_entropy_loss(pred, gt, mask))
        ref = jax.block_until_ready(_reference_jax(pred, gt, mask))
        assert jnp.allclose(out, ref, rtol=1e-5, atol=1e-5), (i, out, ref)

    print("KERNEL_OK")
</pallas_src>

<mosaic_0001>
module attributes {stable_mosaic.version = 11 : i64} {
  func.func @_balance_bce_kernel(%arg0: i32, %arg1: i32, %arg2: memref<1x1x256xf32, #tpu.memory_space<vmem>>, %arg3: memref<1x1x256xf32, #tpu.memory_space<vmem>>, %arg4: memref<1x1x256xf32, #tpu.memory_space<vmem>>, %arg5: memref<1x1x256xf32, #tpu.memory_space<vmem>>, %arg6: memref<1x1x4xf32, #tpu.memory_space<smem>>) attributes {dimension_semantics = [#tpu.dimension_semantics<parallel>, #tpu.dimension_semantics<parallel>], iteration_bounds = array<i64: 2, 1>, scalar_prefetch = 0 : i64, scratch_operands = 0 : i64, tpu.core_type = #tpu.core_type<tc>, window_params = [{transform_indices = @transform_0, window_bounds = array<i64: 1, 1, 256>}, {transform_indices = @transform_1, window_bounds = array<i64: 1, 1, 256>}, {transform_indices = @transform_2, window_bounds = array<i64: 1, 1, 256>}, {transform_indices = @transform_3, window_bounds = array<i64: 1, 1, 256>}, {transform_indices = @transform_4, window_bounds = array<i64: 1, 1, 4>}]} {
    %c0 = arith.constant 0 : index
    %c0_0 = arith.constant 0 : index
    %c0_1 = arith.constant 0 : index
    %0 = vector.load %arg2[%c0, %c0_0, %c0_1] : memref<1x1x256xf32, #tpu.memory_space<vmem>>, vector<1x1x256xf32>
    %c0_2 = arith.constant 0 : index
    %c0_3 = arith.constant 0 : index
    %c0_4 = arith.constant 0 : index
    %1 = vector.load %arg3[%c0_2, %c0_3, %c0_4] : memref<1x1x256xf32, #tpu.memory_space<vmem>>, vector<1x1x256xf32>
    %c0_5 = arith.constant 0 : index
    %c0_6 = arith.constant 0 : index
    %c0_7 = arith.constant 0 : index
    %2 = vector.load %arg4[%c0_5, %c0_6, %c0_7] : memref<1x1x256xf32, #tpu.memory_space<vmem>>, vector<1x1x256xf32>
    %3 = arith.mulf %1, %2 : vector<1x1x256xf32>
    %4 = arith.subf %2, %3 : vector<1x1x256xf32>
    %cst = arith.constant 5.000000e-01 : f32
    %5 = vector.broadcast %cst : f32 to vector<1x1x256xf32>
    %6 = arith.cmpf ogt, %1, %5 : vector<1x1x256xf32>
    %cst_8 = arith.constant 1.000000e+00 : f32
    %7 = vector.broadcast %cst_8 : f32 to vector<1x1x256xf32>
    %8 = arith.subf %7, %0 : vector<1x1x256xf32>
    %9 = arith.select %6, %0, %8 : vector<1x1x256xi1>, vector<1x1x256xf32>
    %10 = math.log %9 : vector<1x1x256xf32>
    %cst_9 = arith.constant -1.000000e+02 : f32
    %11 = vector.broadcast %cst_9 : f32 to vector<1x1x256xf32>
    %12 = arith.maximumf %10, %11 : vector<1x1x256xf32>
    %cst_10 = arith.constant 0.000000e+00 : f32
    %13 = vector.broadcast %cst_10 : f32 to vector<1x1x256xf32>
    %14 = arith.subf %13, %12 : vector<1x1x256xf32>
    %15 = arith.mulf %14, %4 : vector<1x1x256xf32>
    %c0_11 = arith.constant 0 : index
    %c0_12 = arith.constant 0 : index
    %c0_13 = arith.constant 0 : index
    %16 = vector.load %arg5[%c0_11, %c0_12, %c0_13] : memref<1x1x256xf32, #tpu.memory_space<vmem>>, vector<1x1x256xf32>
    tpu.vector_store %arg5[%c0_11, %c0_12, %c0_13], %15 {strides = array<i32>} : memref<1x1x256xf32, #tpu.memory_space<vmem>>, vector<1x1x256xf32>,
    %17 = arith.mulf %14, %3 : vector<1x1x256xf32>
    %18 = vector.shape_cast %17 : vector<1x1x256xf32> to vector<1x1x1x256xf32>
    %cst_14 = arith.constant dense<0.000000e+00> : vector<1xf32>
    %19 = vector.multi_reduction <add>, %18, %cst_14 [1, 2, 3] : vector<1x1x1x256xf32> to vector<1xf32>
    %20 = vector.shape_cast %19 : vector<1xf32> to vector<1x1x1x1xf32>
    %21 = vector.extract %20[0, 0, 0, 0] : f32 from vector<1x1x1x1xf32>
    %c0_15 = arith.constant 0 : index
    %c0_16 = arith.constant 0 : index
    %c0_17 = arith.constant 0 : index
    %22 = memref.load %arg6[%c0_15, %c0_16, %c0_17] : memref<1x1x4xf32, #tpu.memory_space<smem>>
    memref.store %21, %arg6[%c0_15, %c0_16, %c0_17] : memref<1x1x4xf32, #tpu.memory_space<smem>>
    %23 = vector.shape_cast %3 : vector<1x1x256xf32> to vector<1x1x1x256xf32>
    %cst_18 = arith.constant dense<0.000000e+00> : vector<1xf32>
    %24 = vector.multi_reduction <add>, %23, %cst_18 [1, 2, 3] : vector<1x1x1x256xf32> to vector<1xf32>
    %25 = vector.shape_cast %24 : vector<1xf32> to vector<1x1x1x1xf32>
    %26 = vector.extract %25[0, 0, 0, 0] : f32 from vector<1x1x1x1xf32>
    %c0_19 = arith.constant 0 : index
    %c0_20 = arith.constant 0 : index
    %c1 = arith.constant 1 : index
    %27 = memref.load %arg6[%c0_19, %c0_20, %c1] : memref<1x1x4xf32, #tpu.memory_space<smem>>
    memref.store %26, %arg6[%c0_19, %c0_20, %c1] : memref<1x1x4xf32, #tpu.memory_space<smem>>
    %28 = vector.shape_cast %4 : vector<1x1x256xf32> to vector<1x1x1x256xf32>
    %cst_21 = arith.constant dense<0.000000e+00> : vector<1xf32>
    %29 = vector.multi_reduction <add>, %28, %cst_21 [1, 2, 3] : vector<1x1x1x256xf32> to vector<1xf32>
    %30 = vector.shape_cast %29 : vector<1xf32> to vector<1x1x1x1xf32>
    %31 = vector.extract %30[0, 0, 0, 0] : f32 from vector<1x1x1x1xf32>
    %c0_22 = arith.constant 0 : index
    %c0_23 = arith.constant 0 : index
    %c2 = arith.constant 2 : index
    %32 = memref.load %arg6[%c0_22, %c0_23, %c2] : memref<1x1x4xf32, #tpu.memory_space<smem>>
    memref.store %31, %arg6[%c0_22, %c0_23, %c2] : memref<1x1x4xf32, #tpu.memory_space<smem>>
    %33 = vector.shape_cast %15 : vector<1x1x256xf32> to vector<1x1x1x256xf32>
    %cst_24 = arith.constant dense<0.000000e+00> : vector<1xf32>
    %34 = vector.multi_reduction <add>, %33, %cst_24 [1, 2, 3] : vector<1x1x1x256xf32> to vector<1xf32>
    %35 = vector.shape_cast %34 : vector<1xf32> to vector<1x1x1x1xf32>
    %36 = vector.extract %35[0, 0, 0, 0] : f32 from vector<1x1x1x1xf32>
    %c0_25 = arith.constant 0 : index
    %c0_26 = arith.constant 0 : index
    %c3 = arith.constant 3 : index
    %37 = memref.load %arg6[%c0_25, %c0_26, %c3] : memref<1x1x4xf32, #tpu.memory_space<smem>>
    memref.store %36, %arg6[%c0_25, %c0_26, %c3] : memref<1x1x4xf32, #tpu.memory_space<smem>>
    return
  }
  func.func @transform_0(%arg0: i32, %arg1: i32) -> (i32, i32, i32) {
    %c0_i32 = arith.constant 0 : i32
    %c0_i32_0 = arith.constant 0 : i32
    return %arg0, %arg1, %c0_i32 : i32, i32, i32
  }
  func.func @transform_1(%arg0: i32, %arg1: i32) -> (i32, i32, i32) {
    %c0_i32 = arith.constant 0 : i32
    %c0_i32_0 = arith.constant 0 : i32
    return %arg0, %arg1, %c0_i32 : i32, i32, i32
  }
  func.func @transform_2(%arg0: i32, %arg1: i32) -> (i32, i32, i32) {
    %c0_i32 = arith.constant 0 : i32
    %c0_i32_0 = arith.constant 0 : i32
    return %arg0, %arg1, %c0_i32 : i32, i32, i32
  }
  func.func @transform_3(%arg0: i32, %arg1: i32) -> (i32, i32, i32) {
    %c0_i32 = arith.constant 0 : i32
    %c0_i32_0 = arith.constant 0 : i32
    return %arg0, %arg1, %c0_i32 : i32, i32, i32
  }
  func.func @transform_4(%arg0: i32, %arg1: i32) -> (i32, i32, i32) {
    %c0_i32 = arith.constant 0 : i32
    %c0_i32_0 = arith.constant 0 : i32
    return %arg0, %arg1, %c0_i32 : i32, i32, i32
  }
}

</mosaic_0001>

<llo_original>
// kernel: tpu_custom_call.1
$region0: #{tpu_custom_call.1}
  #allocation0 [shape = 'u32[]', space=smem, size = 0x4, offset = 0x4, fixed_abs, tag = 'smem constant byte address 0x4 - core index']
  #allocation1 [shape = 'u32[144,128]{1,0:T(1,128)}', space=vmem, size = 0x12000, scoped, tag = 'internal scratch']
  %s0 = inlined_call_operand.hbm [shape: f32[2,1,256], index: 0, kind: input, shape index: {}]
  %s1 = inlined_call_operand.hbm [shape: f32[2,1,256], index: 1, kind: input, shape index: {}]
  %s2 = inlined_call_operand.vmem [shape: f32[2,1,256], index: 2, kind: input, shape index: {}]
  %s3 = inlined_call_operand.hbm [shape: f32[2,1,256], index: 3, kind: output, shape index: {0}]
  %s4 = inlined_call_operand.hbm [shape: f32[2,1,4], index: 4, kind: output, shape index: {1}]
  %5 = xla_tuple %s3, %s4
  %s6 = sld [smem:[#allocation0]]
  $region61: #{tpu_custom_call.1} parent=0
    _
  %s8 = ssub.s32 1, %s6
  %s9 = scalar_select 0, %s8, %s6
  $region1: #{tpu_custom_call.1} parent=0
    #allocation2 [shape = 'u8[2048]{0}', space=vmem, size = 0x800, scoped, tag = 'input window, operand 0']
    #allocation3 [shape = 's32[2]{0}', space=sflag, size = 0x8, scoped, tag = 'scoped memory for tpu_custom_call.1']
    #allocation4 [shape = 's32[2]{0}', space=sflag, size = 0x8, scoped, tag = 'scoped memory for tpu_custom_call.1']
    #allocation5 [shape = 's32[2]{0}', space=sflag, size = 0x8, scoped, tag = 'scoped memory for tpu_custom_call.1']
    #allocation6 [shape = 'u8[2048]{0}', space=vmem, size = 0x800, scoped, tag = 'input window, operand 1']
    #allocation7 [shape = 's32[2]{0}', space=sflag, size = 0x8, scoped, tag = 'scoped memory for tpu_custom_call.1']
    #allocation8 [shape = 'u8[2048]{0}', space=vmem, size = 0x800, scoped, tag = 'output window, operand 0']
    #allocation9 [shape = 'u8[1024]{0}', space=smem, size = 0x400, scoped, tag = 'output window, operand 1']
    %10 = vsyncpa [#allocation3], 0
    %s11 = scalar_lea.sflag [#allocation3], 1
    %12 = vsyncpa %s11, 0
    %13 = vsyncpa [#allocation7], 0
    %s14 = scalar_lea.sflag [#allocation7], 1
    %15 = vsyncpa %s14, 0
    %16 = vsyncpa [#allocation4], 0
    %s17 = scalar_lea.sflag [#allocation4], 1
    %18 = vsyncpa %s17, 0
    %19 = vsyncpa [#allocation5], 0
    %s20 = scalar_lea.sflag [#allocation5], 1
    %21 = vsyncpa %s20, 0
    loop: start=0, step=1, limit=4
    $region2: #{tpu_custom_call.1} parent=1 // loop_pre_header
      _
    $region3: #{tpu_custom_call.1} parent=1 // loop_header
      %s23 = sphi 0, %s27
      %p24 = scmp.ge.s32.totalorder %s23, 4
      %s30 = sphi 0, %s42
      %s31 = sphi 0, %s38
      %s32 = sphi 0, %s30
      %s33 = sphi 0, %s31
      %s34 = sphi 0, %s32
      %s35 = sphi 0, %s33
      %s47 = sphi 0, %s49
      %s50 = sphi 0, %s47
      %s51 = sphi 0, %s50
      %s67 = sphi 0, %s51
      %s75 = sphi 0, %s77
      %s78 = sphi 0, %s75
      %s79 = sphi 0, %s78
      %s95 = sphi 0, %s79
      %s103 = sphi 0, %s105
      %s106 = sphi 0, %s103
      %s107 = sphi 0, %s106
      %s123 = sphi 0, %s107
      %s131 = sphi 0, %s133
      %s134 = sphi 0, %s131
      %s135 = sphi 0, %s134
      %s151 = sphi 0, %s135
      %s159 = sphi 0, %s161
      %s162 = sphi 0, %s159
      %s163 = sphi 0, %s162
      %s179 = sphi 0, %s163
    $region4: #{tpu_custom_call.1} parent=1 // loop_header_branch
      %26 = sbr.rel (%p24) target = $region8
    $region5: #{tpu_custom_call.1} parent=1 // loop_body
      %s28 = ssub.s32 %s23, 1
      %s29 = ssub.s32 %s23, 2
      %s36 = sadd.s32 1, %s31
      %p37 = scmp.ge.s32.totalorder %s36, 1
      %s38 = scalar_select %p37, 0, %s36
      %s39 = sadd.s32 1, %s30
      %s40 = scalar_select %p37, %s39, %s30
      %p41 = scmp.ge.s32.totalorder %s40, 2
      %s42 = scalar_select %p41, 0, %s40
      %s43 = ssub.s32 %s30, %s42
      %s44 = ssub.s32 %s31, %s38
      %s45 = sor.u32 %s43, %s44
      %p46 = scmp.eq.s32.totalorder %s45, 0
      %s48 = sadd.s32 %s47, 1
      %s49 = scalar_select %p46, %s47, %s48
      %p52 = pneg %p46
      %p53 = scmp.eq.s32.totalorder %s23, 1
      %p54 = por %p52, %p53
      %p55 = scmp.ne.s32.totalorder %s47, %s50
      %p56 = scmp.eq.s32.totalorder %s23, 0
      %p57 = por %p55, %p56
      %p58 = scmp.ne.s32.totalorder %s47, %s50
      %p59 = scmp.eq.s32.totalorder %s28, 1
      %p60 = por %p58, %p59
      %p61 = scmp.ne.s32.totalorder %s50, %s51
      %p62 = scmp.eq.s32.totalorder %s28, 0
      %p63 = por %p61, %p62
      %p64 = scmp.ne.s32.totalorder %s50, %s51
      %p65 = scmp.eq.s32.totalorder %s29, 1
      %p66 = por %p64, %p65
      %p68 = scmp.ne.s32.totalorder %s51, %s67
      %p69 = scmp.eq.s32.totalorder %s29, 0
      %p70 = por %p68, %p69
      %s71 = ssub.s32 %s30, %s42
      %s72 = ssub.s32 %s31, %s38
      %s73 = sor.u32 %s71, %s72
      %p74 = scmp.eq.s32.totalorder %s73, 0
      %s76 = sadd.s32 %s75, 1
      %s77 = scalar_select %p74, %s75, %s76
      %p80 = pneg %p74
      %p81 = scmp.eq.s32.totalorder %s23, 1
      %p82 = por %p80, %p81
      %p83 = scmp.ne.s32.totalorder %s75, %s78
      %p84 = scmp.eq.s32.totalorder %s23, 0
      %p85 = por %p83, %p84
      %p86 = scmp.ne.s32.totalorder %s75, %s78
      %p87 = scmp.eq.s32.totalorder %s28, 1
      %p88 = por %p86, %p87
      %p89 = scmp.ne.s32.totalorder %s78, %s79
      %p90 = scmp.eq.s32.totalorder %s28, 0
      %p91 = por %p89, %p90
      %p92 = scmp.ne.s32.totalorder %s78, %s79
      %p93 = scmp.eq.s32.totalorder %s29, 1
      %p94 = por %p92, %p93
      %p96 = scmp.ne.s32.totalorder %s79, %s95
      %p97 = scmp.eq.s32.totalorder %s29, 0
      %p98 = por %p96, %p97
      %s99 = ssub.s32 %s30, %s42
      %s100 = ssub.s32 %s31, %s38
      %s101 = sor.u32 %s99, %s100
      %p102 = scmp.eq.s32.totalorder %s101, 0
      %s104 = sadd.s32 %s103, 1
      %s105 = scalar_select %p102, %s103, %s104
      %p108 = pneg %p102
      %p109 = scmp.eq.s32.totalorder %s23, 1
      %p110 = por %p108, %p109
      %p111 = scmp.ne.s32.totalorder %s103, %s106
      %p112 = scmp.eq.s32.totalorder %s23, 0
      %p113 = por %p111, %p112
      %p114 = scmp.ne.s32.totalorder %s103, %s106
      %p115 = scmp.eq.s32.totalorder %s28, 1
      %p116 = por %p114, %p115
      %p117 = scmp.ne.s32.totalorder %s106, %s107
      %p118 = scmp.eq.s32.totalorder %s28, 0
      %p119 = por %p117, %p118
      %p120 = scmp.ne.s32.totalorder %s106, %s107
      %p121 = scmp.eq.s32.totalorder %s29, 1
      %p122 = por %p120, %p121
      %p124 = scmp.ne.s32.totalorder %s107, %s123
      %p125 = scmp.eq.s32.totalorder %s29, 0
      %p126 = por %p124, %p125
      %s127 = ssub.s32 %s30, %s42
      %s128 = ssub.s32 %s31, %s38
      %s129 = sor.u32 %s127, %s128
      %p130 = scmp.eq.s32.totalorder %s129, 0
      %s132 = sadd.s32 %s131, 1
      %s133 = scalar_select %p130, %s131, %s132
      %p136 = pneg %p130
      %p137 = scmp.eq.s32.totalorder %s23, 1
      %p138 = por %p136, %p137
      %p139 = scmp.ne.s32.totalorder %s131, %s134
      %p140 = scmp.eq.s32.totalorder %s23, 0
      %p141 = por %p139, %p140
      %p142 = scmp.ne.s32.totalorder %s131, %s134
      %p143 = scmp.eq.s32.totalorder %s28, 1
      %p144 = por %p142, %p143
      %p145 = scmp.ne.s32.totalorder %s134, %s135
      %p146 = scmp.eq.s32.totalorder %s28, 0
      %p147 = por %p145, %p146
      %p148 = scmp.ne.s32.totalorder %s134, %s135
      %p149 = scmp.eq.s32.totalorder %s29, 1
      %p150 = por %p148, %p149
      %p152 = scmp.ne.s32.totalorder %s135, %s151
      %p153 = scmp.eq.s32.totalorder %s29, 0
      %p154 = por %p152, %p153
      %s155 = ssub.s32 %s30, %s42
      %s156 = ssub.s32 %s31, %s38
      %s157 = sor.u32 %s155, %s156
      %p158 = scmp.eq.s32.totalorder %s157, 0
      %s160 = sadd.s32 %s159, 1
      %s161 = scalar_select %p158, %s159, %s160
      %p164 = pneg %p158
      %p165 = scmp.eq.s32.totalorder %s23, 1
      %p166 = por %p164, %p165
      %p167 = scmp.ne.s32.totalorder %s159, %s162
      %p168 = scmp.eq.s32.totalorder %s23, 0
      %p169 = por %p167, %p168
      %p170 = scmp.ne.s32.totalorder %s159, %s162
      %p171 = scmp.eq.s32.totalorder %s28, 1
      %p172 = por %p170, %p171
      %p173 = scmp.ne.s32.totalorder %s162, %s163
      %p174 = scmp.eq.s32.totalorder %s28, 0
      %p175 = por %p173, %p174
      %p176 = scmp.ne.s32.totalorder %s162, %s163
      %p177 = scmp.eq.s32.totalorder %s29, 1
      %p178 = por %p176, %p177
      %p180 = scmp.ne.s32.totalorder %s163, %s179
      %p181 = scmp.eq.s32.totalorder %s29, 0
      %p182 = por %p180, %p181
      %p183 = scmp.le.s32.totalorder 1, %s23
      %p184 = scmp.lt.s32.totalorder %s23, 3
      %p185 = pnand %p183, %p184
      %p186 = pneg %p185
      // Predicated region
      $region9: #{tpu_custom_call.1} parent=5 // pred_check
        _
      $region10: #{tpu_custom_call.1} parent=5 // pred_check_branch
        %188 = sbr.rel (%p185) target = $region12
      $region11: #{tpu_custom_call.1} parent=5 // pred_region
        %s189 = ssub.s32 %s23, 1
      $region12: #{tpu_custom_call.1} parent=5 // pred_fallthru
        _
      %p190 = scmp.lt.s32.totalorder %s23, 2
      // Predicated region
      $region13: #{tpu_custom_call.1} parent=5 // pred_check
        %p191 = pneg %p190
      $region14: #{tpu_custom_call.1} parent=5 // pred_check_branch
        %193 = sbr.rel (%p191) target = $region16
      $region15: #{tpu_custom_call.1} parent=5 // pred_region
        // Predicated region
        $region17: #{tpu_custom_call.1} parent=15 // pred_check
          %p194 = pneg %p57
        $region18: #{tpu_custom_call.1} parent=15 // pred_check_branch
          %196 = sbr.rel (%p194) target = $region20
        $region19: #{tpu_custom_call.1} parent=15 // pred_region
          %s197 = sand.u32 %s47, 1
          %s198 = scalar_lea.sflag [#allocation3], %s197
          %s199 = sand.u32 %s47, 1
          %s200 = smul.addr %s199, 2
          %s201 = scalar_lea.vmem [#allocation2], %s200
          %s203 = ssub.s32 32, 32
          %204 = vsyncadd %s198, %s203
          %s205 = smul.addr %s31, 2
          %s206 = smul.addr %s30, 2
          %s207 = sadd.s32 %s205, %s206
          %s208 = smul.addr %s207, 16
          %s209 = scalar_lea.hbm %s0, %s208
          %s211 = sshll.u32 %s201, 4
          %s212 = int_to_ptr.vmem [resolvable:$true] %s211
          %214 = dma.hbm_to_vmem [thread:$0]  %s209, 32, %s212, %s198
        $region20: #{tpu_custom_call.1} parent=15 // pred_fallthru
          _
        // Predicated region
        $region21: #{tpu_custom_call.1} parent=15 // pred_check
          %p215 = pneg %p85
        $region22: #{tpu_custom_call.1} parent=15 // pred_check_branch
          %217 = sbr.rel (%p215) target = $region24
        $region23: #{tpu_custom_call.1} parent=15 // pred_region
          %s218 = sand.u32 %s75, 1
          %s219 = scalar_lea.sflag [#allocation7], %s218
          %s220 = sand.u32 %s75, 1
          %s221 = smul.addr %s220, 2
          %s222 = scalar_lea.vmem [#allocation6], %s221
          %s224 = ssub.s32 32, 32
          %225 = vsyncadd %s219, %s224
          %s226 = smul.addr %s31, 2
          %s227 = smul.addr %s30, 2
          %s228 = sadd.s32 %s226, %s227
          %s229 = smul.addr %s228, 16
          %s230 = scalar_lea.hbm %s1, %s229
          %s232 = sshll.u32 %s222, 4
          %s233 = int_to_ptr.vmem [resolvable:$true] %s232
          %235 = dma.hbm_to_vmem [thread:$0]  %s230, 32, %s233, %s219
        $region24: #{tpu_custom_call.1} parent=15 // pred_fallthru
          _
        // Predicated region
        $region25: #{tpu_custom_call.1} parent=15 // pred_check
          %p236 = pneg %p113
        $region26: #{tpu_custom_call.1} parent=15 // pred_check_branch
          %238 = sbr.rel (%p236) target = $region28
        $region27: #{tpu_custom_call.1} parent=15 // pred_region
          %p239 = scmp.lt.s32.totalorder %s30, 1
          %s240 = scalar_select %p239, %s30, 1
          %p241 = scmp.lt.s32.totalorder %s31, 0
          %s242 = scalar_select %p241, %s31, 0
          %s243 = smul.addr %s242, 2
          %s244 = smul.addr %s240, 2
          %s245 = sadd.s32 %s243, %s244
          %s246 = scalar_lea.vmem %s2, %s245
        $region28: #{tpu_custom_call.1} parent=15 // pred_fallthru
          _
      $region16: #{tpu_custom_call.1} parent=5 // pred_fallthru
        _
      %p247 = scmp.le.s32.totalorder 1, %s23
      %p248 = scmp.lt.s32.totalorder %s23, 3
      %p249 = pnand %p247, %p248
      %p250 = pneg %p249
      // Predicated region
      $region29: #{tpu_custom_call.1} parent=5 // pred_check
        _
      $region30: #{tpu_custom_call.1} parent=5 // pred_check_branch
        %252 = sbr.rel (%p249) target = $region32
      $region31: #{tpu_custom_call.1} parent=5 // pred_region
        %s253 = ssub.s32 %s23, 1
        %s254 = sand.u32 %s50, 1
        %s255 = scalar_lea.sflag [#allocation3], %s254
        %s256 = sand.u32 %s50, 1
        %s257 = smul.addr %s256, 2
        %s258 = scalar_lea.vmem [#allocation2], %s257
        // Predicated region
        $region33: #{tpu_custom_call.1} parent=31 // pred_check
          %p259 = pneg %p63
        $region34: #{tpu_custom_call.1} parent=31 // pred_check_branch
          %261 = sbr.rel (%p259) target = $region36
        $region35: #{tpu_custom_call.1} parent=31 // pred_region
          %262 = dma.done %s255, 32
        $region36: #{tpu_custom_call.1} parent=31 // pred_fallthru
          _
        %s263 = sand.u32 %s78, 1
        %s264 = scalar_lea.sflag [#allocation7], %s263
        %s265 = sand.u32 %s78, 1
        %s266 = smul.addr %s265, 2
        %s267 = scalar_lea.vmem [#allocation6], %s266
        // Predicated region
        $region37: #{tpu_custom_call.1} parent=31 // pred_check
          %p268 = pneg %p91
        $region38: #{tpu_custom_call.1} parent=31 // pred_check_branch
          %270 = sbr.rel (%p268) target = $region40
        $region39: #{tpu_custom_call.1} parent=31 // pred_region
          %271 = dma.done %s264, 32
        $region40: #{tpu_custom_call.1} parent=31 // pred_fallthru
          _
        %s272 = sand.u32 %s50, 1
        %s273 = scalar_lea.sflag [#allocation3], %s272
        %s274 = sand.u32 %s50, 1
        %s275 = smul.addr %s274, 2
        %s276 = scalar_lea.vmem [#allocation2], %s275
        %p277 = pneg %p63
        %p278 = pneg %p60
        %s279 = sand.u32 %s78, 1
        %s280 = scalar_lea.sflag [#allocation7], %s279
        %s281 = sand.u32 %s78, 1
        %s282 = smul.addr %s281, 2
        %s283 = scalar_lea.vmem [#allocation6], %s282
        %p284 = pneg %p91
        %p285 = pneg %p88
        %p286 = scmp.lt.s32.totalorder %s32, 1
        %s287 = scalar_select %p286, %s32, 1
        %p288 = scmp.lt.s32.totalorder %s33, 0
        %s289 = scalar_select %p288, %s33, 0
        %s290 = smul.addr %s289, 2
        %s291 = smul.addr %s287, 2
        %s292 = sadd.s32 %s290, %s291
        %s293 = scalar_lea.vmem %s2, %s292
        %p294 = pneg %p119
        %p295 = pneg %p116
        %p296 = pneg %p147
        %p297 = pneg %p144
        %s298 = sand.u32 %s134, 1
        %s299 = scalar_lea.sflag [#allocation4], %s298
        %s300 = sand.u32 %s134, 1
        %s301 = smul.addr %s300, 2
        %s302 = scalar_lea.vmem [#allocation8], %s301
        %p303 = pneg %p175
        %p304 = pneg %p172
        %s305 = sand.u32 %s162, 1
        %s306 = scalar_lea.sflag [#allocation5], %s305
        %s307 = sand.u32 %s162, 1
        %s308 = smul.addr %s307, 128
        %s309 = scalar_lea.smem [#allocation9], %s308
        %p310 = scmp.lt.s32.totalorder %s32, 1
        %s311 = scalar_select %p310, %s32, 1
        %p312 = scmp.lt.s32.totalorder %s33, 0
        %s313 = scalar_select %p312, %s33, 0
        %s314 = smul.addr %s313, 2
        %s315 = smul.addr %s311, 2
        %s316 = sadd.s32 %s314, %s315
        %s317 = scalar_lea.vmem %s2, %s316
        %v318 = vld [vmem:[%s258] sm:$0x3]
        %v319 = vld [vmem:[%s267] sm:$0x3]
        %v320 = vld [vmem:[%s317] sm:$0x3]
        %v321 = vmul.f32 %v319, %v320
        %v322 = vsub.f32 %v320, %v321
        %vm323 = vcmp.gt.f32.partialorder %v319, 0.5
        %v324 = vsub.f32 1.0, %v318
        %v325 = vsel %vm323, %v318, %v324
        %v326 = vlog2.pop %v325
        %v327 = vmul.f32 %v326, 0.6931472
        %v328 = vmax.f32 %v327, -100.0
        %v329 = vsub.f32 0.0, %v328
        %v330 = vmul.f32 %v329, %v322
        %v331 = vlaneseq
        %vm332 = vcmp.ge.s32.totalorder %v331, 0
        %vm333 = vcmp.lt.s32.totalorder %v331, 256
        %vm334 = vmand %vm332, %vm333
        %335 = vst.msk [vmem:[%s302] sm:$0x3] %vm334, %v330
        %v336 = vmul.f32 %v329, %v321
        %v338 = vlaneseq
        %v339 = vshrl.u32 %v338, 7
        %v340 = vsub.s32 0, %v339
        %v341 = vrot.slane %v336, %v340
        %v342 = vlaneseq
        %v343 = vshrl.u32 %v342, 7
        %v344 = vsub.s32 1, %v343
        %v345 = vrot.slane %v336, %v344
        %vm348 = vcmask 1040384
        %v349 = vsel %vm348, %v341, 0.0
        %v350 = vsel %vm348, %v345, 0.0
        %v351 = vadd.f32 %v349, %v350
        %352 = vadd.xlane.f32.xlu0 %v351
        %v353 = vpop.xlane.xlu0 %352
        %v354 = vrot.slane %v353, 4
        %v355 = vadd.f32 %v353, %v354
        %v356 = vrot.slane %v355, 2
        %v357 = vadd.f32 %v355, %v356
        %v358 = vrot.slane %v357, 1
        %v359 = vadd.f32 %v357, %v358
        %s360 = vtos %v359
        %s361 = scalar_lea.smem %s309, 0 [#allocation9]
        %362 = sst [smem:[%s361]] %s360
        %v364 = vlaneseq
        %v365 = vshrl.u32 %v364, 7
        %v366 = vsub.s32 0, %v365
        %v367 = vrot.slane %v321, %v366
        %v368 = vlaneseq
        %v369 = vshrl.u32 %v368, 7
        %v370 = vsub.s32 1, %v369
        %v371 = vrot.slane %v321, %v370
        %v374 = vsel %vm348, %v367, 0.0
        %v375 = vsel %vm348, %v371, 0.0
        %v376 = vadd.f32 %v374, %v375
        %377 = vadd.xlane.f32.xlu0 %v376
        %v378 = vpop.xlane.xlu0 %377
        %v379 = vrot.slane %v378, 4
        %v380 = vadd.f32 %v378, %v379
        %v381 = vrot.slane %v380, 2
        %v382 = vadd.f32 %v380, %v381
        %v383 = vrot.slane %v382, 1
        %v384 = vadd.f32 %v382, %v383
        %s385 = vtos %v384
        %s386 = scalar_lea.smem %s309, 1 [#allocation9]
        %387 = sst [smem:[%s386]] %s385
        %v389 = vlaneseq
        %v390 = vshrl.u32 %v389, 7
        %v391 = vsub.s32 0, %v390
        %v392 = vrot.slane %v322, %v391
        %v393 = vlaneseq
        %v394 = vshrl.u32 %v393, 7
        %v395 = vsub.s32 1, %v394
        %v396 = vrot.slane %v322, %v395
        %v399 = vsel %vm348, %v392, 0.0
        %v400 = vsel %vm348, %v396, 0.0
        %v401 = vadd.f32 %v399, %v400
        %402 = vadd.xlane.f32.xlu0 %v401
        %v403 = vpop.xlane.xlu0 %402
        %v404 = vrot.slane %v403, 4
        %v405 = vadd.f32 %v403, %v404
        %v406 = vrot.slane %v405, 2
        %v407 = vadd.f32 %v405, %v406
        %v408 = vrot.slane %v407, 1
        %v409 = vadd.f32 %v407, %v408
        %s410 = vtos %v409
        %s411 = scalar_lea.smem %s309, 2 [#allocation9]
        %412 = sst [smem:[%s411]] %s410
        %v414 = vlaneseq
        %v415 = vshrl.u32 %v414, 7
        %v416 = vsub.s32 0, %v415
        %v417 = vrot.slane %v330, %v416
        %v418 = vlaneseq
        %v419 = vshrl.u32 %v418, 7
        %v420 = vsub.s32 1, %v419
        %v421 = vrot.slane %v330, %v420
        %v424 = vsel %vm348, %v417, 0.0
        %v425 = vsel %vm348, %v421, 0.0
        %v426 = vadd.f32 %v424, %v425
        %427 = vadd.xlane.f32.xlu0 %v426
        %v428 = vpop.xlane.xlu0 %427
        %v429 = vrot.slane %v428, 4
        %v430 = vadd.f32 %v428, %v429
        %v431 = vrot.slane %v430, 2
        %v432 = vadd.f32 %v430, %v431
        %v433 = vrot.slane %v432, 1
        %v434 = vadd.f32 %v432, %v433
        %s435 = vtos %v434
        %s436 = scalar_lea.smem %s309, 3 [#allocation9]
        %437 = sst [smem:[%s436]] %s435
        %s438 = sand.u32 %s134, 1
        %s439 = scalar_lea.sflag [#allocation4], %s438
        %s440 = sand.u32 %s134, 1
        %s441 = smul.addr %s440, 2
        %s442 = scalar_lea.vmem [#allocation8], %s441
        %s443 = sand.u32 %s162, 1
        %s444 = scalar_lea.sflag [#allocation5], %s443
        %s445 = sand.u32 %s162, 1
        %s446 = smul.addr %s445, 128
        %s447 = scalar_lea.smem [#allocation9], %s446
        // Predicated region
        $region41: #{tpu_custom_call.1} parent=31 // pred_check
          %p448 = pneg %p144
        $region42: #{tpu_custom_call.1} parent=31 // pred_check_branch
          %450 = sbr.rel (%p448) target = $region44
        $region43: #{tpu_custom_call.1} parent=31 // pred_region
          %s452 = ssub.s32 32, 32
          %453 = vsyncadd %s439, %s452
          %s454 = smul.addr %s33, 2
          %s455 = smul.addr %s32, 2
          %s456 = sadd.s32 %s454, %s455
          %s457 = smul.addr %s456, 16
          %s458 = scalar_lea.hbm %s3, %s457
          %s460 = sshll.u32 %s442, 4
          %s461 = int_to_ptr.vmem [resolvable:$true] %s460
          %463 = dma.vmem_to_hbm [thread:$0]  %s461, 32, %s458, %s439
        $region44: #{tpu_custom_call.1} parent=31 // pred_fallthru
          _
        // Predicated region
        $region45: #{tpu_custom_call.1} parent=31 // pred_check
          %p464 = pneg %p172
        $region46: #{tpu_custom_call.1} parent=31 // pred_check_branch
          %466 = sbr.rel (%p464) target = $region48
        $region47: #{tpu_custom_call.1} parent=31 // pred_region
          %s468 = ssub.s32 16, 16
          %469 = vsyncadd %s444, %s468
          %s470 = sadd.s32 %s33, %s32
          %s471 = smul.addr %s470, 16
          %s472 = scalar_lea.hbm %s4, %s471
          %475 = dma.smem_to_hbm %s447, 16, %s472, %s444
        $region48: #{tpu_custom_call.1} parent=31 // pred_fallthru
          _
      $region32: #{tpu_custom_call.1} parent=5 // pred_fallthru
        _
      %p476 = scmp.le.s32.totalorder 2, %s23
      // Predicated region
      $region49: #{tpu_custom_call.1} parent=5 // pred_check
        %p477 = pneg %p476
      $region50: #{tpu_custom_call.1} parent=5 // pred_check_branch
        %479 = sbr.rel (%p477) target = $region52
      $region51: #{tpu_custom_call.1} parent=5 // pred_region
        %s480 = ssub.s32 %s23, 2
        // Predicated region
        $region53: #{tpu_custom_call.1} parent=51 // pred_check
          %p481 = pneg %p150
        $region54: #{tpu_custom_call.1} parent=51 // pred_check_branch
          %483 = sbr.rel (%p481) target = $region56
        $region55: #{tpu_custom_call.1} parent=51 // pred_region
          %s484 = sand.u32 %s135, 1
          %s485 = scalar_lea.sflag [#allocation4], %s484
          %s486 = sand.u32 %s135, 1
          %s487 = smul.addr %s486, 2
          %s488 = scalar_lea.vmem [#allocation8], %s487
          %489 = dma.done %s485, 32
        $region56: #{tpu_custom_call.1} parent=51 // pred_fallthru
          _
        // Predicated region
        $region57: #{tpu_custom_call.1} parent=51 // pred_check
          %p490 = pneg %p178
        $region58: #{tpu_custom_call.1} parent=51 // pred_check_branch
          %492 = sbr.rel (%p490) target = $region60
        $region59: #{tpu_custom_call.1} parent=51 // pred_region
          %s493 = sand.u32 %s163, 1
          %s494 = scalar_lea.sflag [#allocation5], %s493
          %s495 = sand.u32 %s163, 1
          %s496 = smul.addr %s495, 128
          %s497 = scalar_lea.smem [#allocation9], %s496
          %498 = dma.done %s494, 16
        $region60: #{tpu_custom_call.1} parent=51 // pred_fallthru
          _
        %499 = sfence
      $region52: #{tpu_custom_call.1} parent=5 // pred_fallthru
        _
    $region6: #{tpu_custom_call.1} parent=1 // loop_footer
      %s27 = sadd.s32 1, %s23
    $region7: #{tpu_custom_call.1} parent=1 // loop_footer_branch
      %22 = sbr.rel target = $region3
    $region8: #{tpu_custom_call.1} parent=1 // loop_exit
      _
    %500 = vsyncpa [#allocation3], 1
    %s501 = scalar_lea.sflag [#allocation3], 1
    %502 = vsyncpa %s501, 1
    %503 = vsyncpa [#allocation7], 1
    %s504 = scalar_lea.sflag [#allocation7], 1
    %505 = vsyncpa %s504, 1
    %506 = vsyncpa [#allocation4], 1
    %s507 = scalar_lea.sflag [#allocation4], 1
    %508 = vsyncpa %s507, 1
    %509 = vsyncpa [#allocation5], 1
    %s510 = scalar_lea.sflag [#allocation5], 1
    %511 = vsyncpa %s510, 1

</llo_original>
